<compile_context>
chip_gen: v7x
topology: tpu7x:2x2x1
jax: 0.10.0
libtpu: 0.0.40
codegen_flags: <defaults>
</compile_context>

<pallas_src>
import math

import jax
import jax.numpy as jnp
from jax.experimental import pallas as pl
from jax.experimental.pallas import tpu as pltpu


# ----------------------------- Pallas kernel ------------------------------- #

def _flatten_copy_kernel(x_ref, o_ref):
    # Lane/sublane-dense tile copy: (blk_rows, lanes) in -> (blk_rows, lanes) out.
    o_ref[...] = x_ref[...]


# ------------------------------ wrapper ------------------------------------ #

def _round_up(a, b):
    return ((a + b - 1) // b) * b


def pallas_flatten(x, *, target_block_bytes=1 << 20):
    """Equivalent of torch Flatten: (N, d1, d2, ...) -> (N, d1*d2*...)."""
    n = x.shape[0]
    f = math.prod(x.shape[1:]) if x.ndim > 1 else 1
    total = n * f
    itemsize = jnp.dtype(x.dtype).itemsize

    # Sublane packing granule per dtype (f32: 8, bf16: 16, int8/fp8: 32).
    sub = {4: 8, 2: 16, 1: 32}.get(itemsize, 8)

    # Lane width: largest multiple of 128 (capped at 1024) that still leaves
    # at least `sub` rows, so the slab is both lane- and sublane-dense.
    lanes = 128
    for cand in (1024, 512, 256, 128):
        if total >= cand * sub:
            lanes = cand
            break

    # Rows of the (rows, lanes) slab, rounded up to the sublane granule.
    rows = _round_up(pl.cdiv(total, lanes), sub)

    # Block rows: ~target_block_bytes per block, multiple of `sub`, <= slab.
    blk_rows = max(sub, (target_block_bytes // (lanes * itemsize)) // sub * sub)
    blk_rows = min(blk_rows, rows)

    # Pad the payload so the slab is an exact multiple of the block: every
    # grid step is a full, unmasked (blk_rows, lanes) copy (no vst.msk).
    rows_padded = _round_up(rows, blk_rows)
    padded_total = rows_padded * lanes

    x_flat = x.reshape(total)
    if padded_total != total:
        x_flat = jnp.pad(x_flat, (0, padded_total - total))
    x2 = x_flat.reshape(rows_padded, lanes)

    grid = (rows_padded // blk_rows,)

    out2 = pl.pallas_call(
        _flatten_copy_kernel,
        out_shape=jax.ShapeDtypeStruct((rows_padded, lanes), x.dtype),
        grid=grid,
        in_specs=[pl.BlockSpec((blk_rows, lanes), lambda i: (i, 0))],
        out_specs=pl.BlockSpec((blk_rows, lanes), lambda i: (i, 0)),
        compiler_params=pltpu.CompilerParams(
            dimension_semantics=("parallel",),
            # 2 arrays x 2 buffers x ~1 MiB blocks ~= 4 MiB; 32 MiB keeps full
            # pipeline depth on v5e/v6e and fits v7x's 64 MiB physical VMEM.
            vmem_limit_bytes=32 * 1024 * 1024,
        ),
        cost_estimate=pl.CostEstimate(
            flops=0,
            transcendentals=0,
            bytes_accessed=2 * padded_total * itemsize,
        ),
    )(x2)

    out_flat = out2.reshape(padded_total)
    if padded_total != total:
        out_flat = out_flat[:total]
    return out_flat.reshape(n, f)


# --------------------------- pure-JAX reference ----------------------------- #

def reference_flatten(x):
    return x.reshape(x.shape[0], -1)


# ---------------------------------- main ------------------------------------ #

if __name__ == "__main__":
    key = jax.random.PRNGKey(0)

    # Shapes consistent with the module: batch=2, channels=4, spatial=16.
    x = jax.random.normal(key, (2, 4, 16, 16), dtype=jnp.float32)

    out = jax.block_until_ready(pallas_flatten(x))
    assert out.shape == (2, 4 * 16 * 16), out.shape

    ref = jax.block_until_ready(reference_flatten(x))
    if not jnp.array_equal(out, ref):
        raise AssertionError("Pallas Flatten output does not match reference")

    # Exercise the non-128-aligned path (padding + slice instead of the old
    # monolithic-block fallback).
    key2 = jax.random.PRNGKey(0)
    y = jax.random.normal(key2, (2, 3, 5, 7), dtype=jnp.float32)
    out_y = jax.block_until_ready(pallas_flatten(y))
    if not jnp.array_equal(out_y, reference_flatten(y)):
        raise AssertionError("Pallas Flatten (padded path) does not match reference")

    print("KERNEL_OK")
</pallas_src>

<mosaic_0001>
module attributes {stable_mosaic.version = 11 : i64} {
  func.func @_flatten_copy_kernel(%arg0: i32, %arg1: memref<8x256xf32, #tpu.memory_space<vmem>>, %arg2: memref<8x256xf32, #tpu.memory_space<vmem>>) attributes {dimension_semantics = [#tpu.dimension_semantics<parallel>], iteration_bounds = array<i64: 1>, scalar_prefetch = 0 : i64, scratch_operands = 0 : i64, tpu.core_type = #tpu.core_type<tc>, window_params = [{transform_indices = @transform_0, window_bounds = array<i64: 8, 256>}, {transform_indices = @transform_1, window_bounds = array<i64: 8, 256>}]} {
    %c0 = arith.constant 0 : index
    %c0_0 = arith.constant 0 : index
    %0 = vector.load %arg1[%c0, %c0_0] : memref<8x256xf32, #tpu.memory_space<vmem>>, vector<8x256xf32>
    %c0_1 = arith.constant 0 : index
    %c0_2 = arith.constant 0 : index
    %1 = vector.load %arg2[%c0_1, %c0_2] : memref<8x256xf32, #tpu.memory_space<vmem>>, vector<8x256xf32>
    tpu.vector_store %arg2[%c0_1, %c0_2], %0 {strides = array<i32>} : memref<8x256xf32, #tpu.memory_space<vmem>>, vector<8x256xf32>,
    return
  }
  func.func @transform_0(%arg0: i32) -> (i32, i32) {
    %c0_i32 = arith.constant 0 : i32
    %c0_i32_0 = arith.constant 0 : i32
    return %arg0, %c0_i32 : i32, i32
  }
  func.func @transform_1(%arg0: i32) -> (i32, i32) {
    %c0_i32 = arith.constant 0 : i32
    %c0_i32_0 = arith.constant 0 : i32
    return %arg0, %c0_i32 : i32, i32
  }
}

</mosaic_0001>

<llo_original>
// kernel: tpu_custom_call.1
$region0: #{tpu_custom_call.1}
  #allocation0 [shape = 'u32[]', space=smem, size = 0x4, offset = 0x4, fixed_abs, tag = 'smem constant byte address 0x4 - core index']
  #allocation1 [shape = 'u32[144,128]{1,0:T(1,128)}', space=vmem, size = 0x12000, scoped, tag = 'internal scratch']
  %s0 = inlined_call_operand.hbm [shape: f32[8,256], index: 0, kind: input, shape index: {}]
  %s1 = inlined_call_operand.hbm [shape: f32[8,256], index: 1, kind: output, shape index: {}]
  %s2 = sld [smem:[#allocation0]]
  $region18: #{tpu_custom_call.1} parent=0
    _
  %s4 = ssub.s32 1, %s2
  %s5 = scalar_select 0, %s4, %s2
  $region1: #{tpu_custom_call.1} parent=0
    #allocation2 [shape = 'u8[8192]{0}', space=vmem, size = 0x2000, scoped, tag = 'input window, operand 0, single buffered']
    #allocation3 [shape = 's32[1]{0}', space=sflag, size = 0x4, scoped, tag = 'scoped memory for tpu_custom_call.1']
    #allocation4 [shape = 's32[1]{0}', space=sflag, size = 0x4, scoped, tag = 'scoped memory for tpu_custom_call.1']
    #allocation5 [shape = 'u8[8192]{0}', space=vmem, size = 0x2000, scoped, tag = 'output window, operand 0, single buffered']
    %6 = vsyncpa [#allocation3], 0
    %7 = vsyncpa [#allocation4], 0
    // Predicated region
    $region2: #{tpu_custom_call.1} parent=1 // pred_check
      _
    $region3: #{tpu_custom_call.1} parent=1 // pred_check_branch
      %9 = sbr.rel (0) target = $region5
    $region4: #{tpu_custom_call.1} parent=1 // pred_region
      %s11 = ssub.s32 256, 256
      %12 = vsyncadd [#allocation3], %s11
      %s14 = sshll.u32 [#allocation2], 4
      %s15 = int_to_ptr.vmem [resolvable:$true] %s14
      %17 = dma.hbm_to_vmem [thread:$0]  %s0, 256, %s15, [#allocation3]
    $region5: #{tpu_custom_call.1} parent=1 // pred_fallthru
      _
    // Predicated region
    $region6: #{tpu_custom_call.1} parent=1 // pred_check
      _
    $region7: #{tpu_custom_call.1} parent=1 // pred_check_branch
      %19 = sbr.rel (0) target = $region9
    $region8: #{tpu_custom_call.1} parent=1 // pred_region
      %20 = dma.done [#allocation3], 256
    $region9: #{tpu_custom_call.1} parent=1 // pred_fallthru
      _
    %v21 = vld [vmem:[#allocation2] sm:$0xff]
    %v22 = vld [vmem:[#allocation2 + $0x8] sm:$0xff]
    %23 = vst [vmem:[#allocation5] sm:$0xff] %v21
    %24 = vst [vmem:[#allocation5 + $0x8] sm:$0xff] %v22
    // Predicated region
    $region10: #{tpu_custom_call.1} parent=1 // pred_check
      _
    $region11: #{tpu_custom_call.1} parent=1 // pred_check_branch
      %26 = sbr.rel (0) target = $region13
    $region12: #{tpu_custom_call.1} parent=1 // pred_region
      %s28 = ssub.s32 256, 256
      %29 = vsyncadd [#allocation4], %s28
      %s31 = sshll.u32 [#allocation5], 4
      %s32 = int_to_ptr.vmem [resolvable:$true] %s31
      %34 = dma.vmem_to_hbm [thread:$0]  %s32, 256, %s1, [#allocation4]
    $region13: #{tpu_custom_call.1} parent=1 // pred_fallthru
      _
    // Predicated region
    $region14: #{tpu_custom_call.1} parent=1 // pred_check
      _
    $region15: #{tpu_custom_call.1} parent=1 // pred_check_branch
      %36 = sbr.rel (0) target = $region17
    $region16: #{tpu_custom_call.1} parent=1 // pred_region
      %37 = dma.done [#allocation4], 256
    $region17: #{tpu_custom_call.1} parent=1 // pred_fallthru
      _
    %38 = vsyncpa [#allocation3], 1
    %39 = vsyncpa [#allocation4], 1

</llo_original>
